<compile_context>
chip_gen: v7x
topology: tpu7x:2x2x1
jax: 0.10.0
libtpu: 0.0.40
codegen_flags: <defaults>
</compile_context>

<pallas_src>
import jax
import jax.numpy as jnp
from jax.experimental import pallas as pl
from jax.experimental.pallas import tpu as pltpu

# ---- synthetic PromptTuningConfig ------------------------------------------
VOCAB = 32
HIDDEN = 32
NUM_VIRTUAL_TOKENS = 8
NUM_TRANSFORMER_SUBMODULES = 2          # config.num_transformer_submodules default
TOTAL_VIRTUAL = NUM_VIRTUAL_TOKENS * NUM_TRANSFORMER_SUBMODULES  # 16
VPAD = 128                               # vocab padded to a lane-dense width


# ---- fused forward kernel ----------------------------------------------------
def _fused_forward_kernel(ids_ref, w_ref, p_ref, out_ref):
    """One grid step = one batch element.

    ids_ref : SMEM int32 (B, S)           -- scalar-prefetched token ids
    w_ref   : VMEM bf16 (VPAD, HIDDEN)    -- word embeddings, rows >= VOCAB zero
    p_ref   : VMEM bf16 (TOTAL_VIRTUAL, HIDDEN)
    out_ref : VMEM f32  (1, TOTAL_VIRTUAL + S, VPAD) -- lane-dense padded logits
    """
    b = pl.program_id(0)
    s = ids_ref.shape[1]
    vpad = w_ref.shape[0]
    wdt = w_ref.dtype

    # --- word-embedding gather via one-hot matmul (robust TPU gather) -------
    # One lane iota, reused for every row; per-row scalar id from SMEM.
    lane = jax.lax.broadcasted_iota(jnp.int32, (1, vpad), 1)        # (1, VPAD)
    onehot = jnp.concatenate(
        [(lane == ids_ref[b, i]).astype(wdt) for i in range(s)], axis=0
    )                                                               # (S, VPAD) bf16
    inp_emb = jnp.dot(onehot, w_ref[...],
                      preferred_element_type=jnp.float32)           # (S, H) f32
    # one-hot selection of bf16 rows -> cast back is lossless
    inp_emb = inp_emb.astype(wdt)

    # --- prepend prompt embeddings (identity gather of arange tokens) -------
    h = jnp.concatenate([p_ref[...], inp_emb], axis=0)              # (T+S, H) bf16

    # --- tied LM head: x @ W^T, contracting last dims (no transpose op) -----
    logits = jax.lax.dot_general(
        h, w_ref[...],
        dimension_numbers=(((1,), (1,)), ((), ())),
        preferred_element_type=jnp.float32)                         # (T+S, VPAD) f32

    out_ref[0] = logits


# ---- PeftModel (prompt tuning) ----------------------------------------------
class PeftModelPallas:
    """JAX/Pallas re-implementation of PeftModel forward-path semantics."""

    def __init__(self, key):
        k_word, k_prompt = jax.random.split(key)
        # base_model word embeddings (vocab_size rows -> picked as word_embeddings)
        self.word_embeddings = 0.02 * jax.random.normal(
            k_word, (VOCAB, HIDDEN), jnp.float32
        )
        # PromptEmbedding.embeddings.weight:
        #   (num_virtual_tokens * num_transformer_submodules, token_dim)
        self.prompt_embeddings = 0.02 * jax.random.normal(
            k_prompt, (TOTAL_VIRTUAL, HIDDEN), jnp.float32
        )
        # self.prompt_tokens[adapter] = arange(total_virtual_tokens)
        self.prompt_tokens = jnp.arange(TOTAL_VIRTUAL, dtype=jnp.int32)
        self.inference_mode = False  # PromptTuningConfig default

        # One-time precomputed kernel operands (no per-call wrapper ops):
        #   vocab padded to 128 lanes (lane-dense stores), bf16 MXU operands.
        w_pad = jnp.zeros((VPAD, HIDDEN), jnp.float32).at[:VOCAB].set(
            self.word_embeddings)
        self._w_pad_bf16 = w_pad.astype(jnp.bfloat16)
        self._prompt_bf16 = self.prompt_embeddings.astype(jnp.bfloat16)

    def get_prompt(self, batch_size):
        # Single-adapter branch of PeftModel.get_prompt:
        # prompt_tokens is arange(total_virtual_tokens), so the embedding
        # "lookup" is the identity on the prompt table -> pure broadcast
        # (both inference_mode branches reduce to this).  No kernel needed.
        return jnp.broadcast_to(
            self.prompt_embeddings[None], (batch_size, TOTAL_VIRTUAL, HIDDEN)
        )

    def forward(self, input_ids):
        """PeftModel.forward -> base model forward with prompts prepended."""
        b, s = input_ids.shape
        t_total = TOTAL_VIRTUAL + s

        out_padded = pl.pallas_call(
            _fused_forward_kernel,
            out_shape=jax.ShapeDtypeStruct((b, t_total, VPAD), jnp.float32),
            grid_spec=pltpu.PrefetchScalarGridSpec(
                num_scalar_prefetch=1,                    # input_ids -> SMEM
                grid=(b,),
                in_specs=[
                    pl.BlockSpec((VPAD, HIDDEN), lambda i, ids: (0, 0)),
                    pl.BlockSpec((TOTAL_VIRTUAL, HIDDEN), lambda i, ids: (0, 0)),
                ],
                out_specs=pl.BlockSpec((1, t_total, VPAD),
                                       lambda i, ids: (i, 0, 0)),
            ),
            compiler_params=pltpu.CompilerParams(
                dimension_semantics=("parallel",)),
        )(input_ids.astype(jnp.int32), self._w_pad_bf16, self._prompt_bf16)

        return out_padded[..., :VOCAB]                    # drop lane padding

    # TODO(synk): save_pretrained / from_pretrained / load_adapter /
    # add_adapter are checkpoint & hub plumbing with no Pallas equivalent.


# ---- reference (pure JAX, same bf16 operand precision) -----------------------
def _reference_forward(model, input_ids):
    b, s = input_ids.shape
    w16 = model.word_embeddings.astype(jnp.bfloat16)
    p16 = model.prompt_embeddings.astype(jnp.bfloat16)
    inp_emb = w16[input_ids]                                     # (B,S,H)
    prompts = jnp.broadcast_to(p16[None], (b, TOTAL_VIRTUAL, HIDDEN))
    h = jnp.concatenate([prompts, inp_emb], axis=1)              # (B,T+S,H)
    return jnp.einsum("bth,vh->btv", h, w16,
                      preferred_element_type=jnp.float32)


if __name__ == "__main__":
    key = jax.random.PRNGKey(0)
    k_model, k_ids = jax.random.split(key)

    model = PeftModelPallas(k_model)

    B, S = 2, 8
    input_ids = jax.random.randint(k_ids, (B, S), 0, VOCAB, dtype=jnp.int32)

    logits = jax.block_until_ready(model.forward(input_ids))
    assert logits.shape == (B, TOTAL_VIRTUAL + S, VOCAB), logits.shape

    ref = _reference_forward(model, input_ids)
    err = float(jnp.max(jnp.abs(logits - ref)))
    assert jnp.allclose(logits, ref, atol=1e-4, rtol=1e-4), err

    prompts = jax.block_until_ready(model.get_prompt(B))
    assert prompts.shape == (B, TOTAL_VIRTUAL, HIDDEN)

    print("KERNEL_OK")
</pallas_src>

<mosaic_0001>
module attributes {stable_mosaic.version = 11 : i64} {
  func.func @_fused_forward_kernel(%arg0: i32, %arg1: memref<2x8xi32, #tpu.memory_space<smem>>, %arg2: memref<128x32xbf16, #tpu.memory_space<vmem>>, %arg3: memref<16x32xbf16, #tpu.memory_space<vmem>>, %arg4: memref<1x24x128xf32, #tpu.memory_space<vmem>>) attributes {dimension_semantics = [#tpu.dimension_semantics<parallel>], iteration_bounds = array<i64: 2>, scalar_prefetch = 1 : i64, scratch_operands = 0 : i64, tpu.core_type = #tpu.core_type<tc>, window_params = [{pipeline_mode = #tpu.pipeline_mode<synchronous>, transform_indices = @transform_0, window_bounds = array<i64: 128, 32>}, {pipeline_mode = #tpu.pipeline_mode<synchronous>, transform_indices = @transform_1, window_bounds = array<i64: 16, 32>}, {transform_indices = @transform_2, window_bounds = array<i64: 1, 24, 128>}]} {
    %0 = tpu.iota {dimensions = array<i32: 1>} : vector<1x128xi32>
    %1 = arith.index_cast %arg0 : i32 to index
    %c0 = arith.constant 0 : index
    %2 = memref.load %arg1[%1, %c0] : memref<2x8xi32, #tpu.memory_space<smem>>
    %3 = vector.broadcast %2 : i32 to vector<1x128xi32>
    %4 = arith.cmpi eq, %0, %3 : vector<1x128xi32>
    %5 = arith.extui %4 : vector<1x128xi1> to vector<1x128xi32>
    %6 = arith.sitofp %5 : vector<1x128xi32> to vector<1x128xf32>
    %7 = arith.truncf %6 : vector<1x128xf32> to vector<1x128xbf16>
    %8 = arith.index_cast %arg0 : i32 to index
    %c1 = arith.constant 1 : index
    %9 = memref.load %arg1[%8, %c1] : memref<2x8xi32, #tpu.memory_space<smem>>
    %10 = vector.broadcast %9 : i32 to vector<1x128xi32>
    %11 = arith.cmpi eq, %0, %10 : vector<1x128xi32>
    %12 = arith.extui %11 : vector<1x128xi1> to vector<1x128xi32>
    %13 = arith.sitofp %12 : vector<1x128xi32> to vector<1x128xf32>
    %14 = arith.truncf %13 : vector<1x128xf32> to vector<1x128xbf16>
    %15 = arith.index_cast %arg0 : i32 to index
    %c2 = arith.constant 2 : index
    %16 = memref.load %arg1[%15, %c2] : memref<2x8xi32, #tpu.memory_space<smem>>
    %17 = vector.broadcast %16 : i32 to vector<1x128xi32>
    %18 = arith.cmpi eq, %0, %17 : vector<1x128xi32>
    %19 = arith.extui %18 : vector<1x128xi1> to vector<1x128xi32>
    %20 = arith.sitofp %19 : vector<1x128xi32> to vector<1x128xf32>
    %21 = arith.truncf %20 : vector<1x128xf32> to vector<1x128xbf16>
    %22 = arith.index_cast %arg0 : i32 to index
    %c3 = arith.constant 3 : index
    %23 = memref.load %arg1[%22, %c3] : memref<2x8xi32, #tpu.memory_space<smem>>
    %24 = vector.broadcast %23 : i32 to vector<1x128xi32>
    %25 = arith.cmpi eq, %0, %24 : vector<1x128xi32>
    %26 = arith.extui %25 : vector<1x128xi1> to vector<1x128xi32>
    %27 = arith.sitofp %26 : vector<1x128xi32> to vector<1x128xf32>
    %28 = arith.truncf %27 : vector<1x128xf32> to vector<1x128xbf16>
    %29 = arith.index_cast %arg0 : i32 to index
    %c4 = arith.constant 4 : index
    %30 = memref.load %arg1[%29, %c4] : memref<2x8xi32, #tpu.memory_space<smem>>
    %31 = vector.broadcast %30 : i32 to vector<1x128xi32>
    %32 = arith.cmpi eq, %0, %31 : vector<1x128xi32>
    %33 = arith.extui %32 : vector<1x128xi1> to vector<1x128xi32>
    %34 = arith.sitofp %33 : vector<1x128xi32> to vector<1x128xf32>
    %35 = arith.truncf %34 : vector<1x128xf32> to vector<1x128xbf16>
    %36 = arith.index_cast %arg0 : i32 to index
    %c5 = arith.constant 5 : index
    %37 = memref.load %arg1[%36, %c5] : memref<2x8xi32, #tpu.memory_space<smem>>
    %38 = vector.broadcast %37 : i32 to vector<1x128xi32>
    %39 = arith.cmpi eq, %0, %38 : vector<1x128xi32>
    %40 = arith.extui %39 : vector<1x128xi1> to vector<1x128xi32>
    %41 = arith.sitofp %40 : vector<1x128xi32> to vector<1x128xf32>
    %42 = arith.truncf %41 : vector<1x128xf32> to vector<1x128xbf16>
    %43 = arith.index_cast %arg0 : i32 to index
    %c6 = arith.constant 6 : index
    %44 = memref.load %arg1[%43, %c6] : memref<2x8xi32, #tpu.memory_space<smem>>
    %45 = vector.broadcast %44 : i32 to vector<1x128xi32>
    %46 = arith.cmpi eq, %0, %45 : vector<1x128xi32>
    %47 = arith.extui %46 : vector<1x128xi1> to vector<1x128xi32>
    %48 = arith.sitofp %47 : vector<1x128xi32> to vector<1x128xf32>
    %49 = arith.truncf %48 : vector<1x128xf32> to vector<1x128xbf16>
    %50 = arith.index_cast %arg0 : i32 to index
    %c7 = arith.constant 7 : index
    %51 = memref.load %arg1[%50, %c7] : memref<2x8xi32, #tpu.memory_space<smem>>
    %52 = vector.broadcast %51 : i32 to vector<1x128xi32>
    %53 = arith.cmpi eq, %0, %52 : vector<1x128xi32>
    %54 = arith.extui %53 : vector<1x128xi1> to vector<1x128xi32>
    %55 = arith.sitofp %54 : vector<1x128xi32> to vector<1x128xf32>
    %56 = arith.truncf %55 : vector<1x128xf32> to vector<1x128xbf16>
    %57 = tpu.concatenate %7, %14, %21, %28, %35, %42, %49, %56 in 0 : vector<1x128xbf16>, vector<1x128xbf16>, vector<1x128xbf16>, vector<1x128xbf16>, vector<1x128xbf16>, vector<1x128xbf16>, vector<1x128xbf16>, vector<1x128xbf16> -> vector<8x128xbf16>
    %c0_0 = arith.constant 0 : index
    %c0_1 = arith.constant 0 : index
    %58 = vector.load %arg2[%c0_0, %c0_1] : memref<128x32xbf16, #tpu.memory_space<vmem>>, vector<128x32xbf16>
    %cst = arith.constant dense<0.000000e+00> : vector<8x32xf32>
    %59 = tpu.matmul %57, %58, %cst {dimension_numbers = #tpu.dot_dimension_numbers<[1], [0], [0], [1], [0, 0, 1, 1], [], []>} : vector<8x128xbf16>, vector<128x32xbf16>, vector<8x32xf32> -> vector<8x32xf32>
    %60 = arith.truncf %59 : vector<8x32xf32> to vector<8x32xbf16>
    %c0_2 = arith.constant 0 : index
    %c0_3 = arith.constant 0 : index
    %61 = vector.load %arg3[%c0_2, %c0_3] : memref<16x32xbf16, #tpu.memory_space<vmem>>, vector<16x32xbf16>
    %62 = tpu.concatenate %61, %60 in 0 : vector<16x32xbf16>, vector<8x32xbf16> -> vector<24x32xbf16>
    %c0_4 = arith.constant 0 : index
    %c0_5 = arith.constant 0 : index
    %63 = vector.load %arg2[%c0_4, %c0_5] : memref<128x32xbf16, #tpu.memory_space<vmem>>, vector<128x32xbf16>
    %cst_6 = arith.constant dense<0.000000e+00> : vector<24x128xf32>
    %64 = tpu.matmul %62, %63, %cst_6 {dimension_numbers = #tpu.dot_dimension_numbers<[1], [1], [0], [0], [0, 0, 1, 0], [], []>} : vector<24x32xbf16>, vector<128x32xbf16>, vector<24x128xf32> -> vector<24x128xf32>
    %c0_7 = arith.constant 0 : index
    %c0_8 = arith.constant 0 : index
    %c0_9 = arith.constant 0 : index
    %65 = vector.load %arg4[%c0_7, %c0_8, %c0_9] : memref<1x24x128xf32, #tpu.memory_space<vmem>>, vector<1x24x128xf32>
    %66 = vector.shape_cast %65 : vector<1x24x128xf32> to vector<24x128xf32>
    %67 = vector.shape_cast %64 : vector<24x128xf32> to vector<1x24x128xf32>
    tpu.vector_store %arg4[%c0_7, %c0_8, %c0_9], %67 {strides = array<i32>} : memref<1x24x128xf32, #tpu.memory_space<vmem>>, vector<1x24x128xf32>,
    return
  }
  func.func @transform_0(%arg0: i32, %arg1: memref<2x8xi32, #tpu.memory_space<smem>>) -> (i32, i32) {
    %c0_i32 = arith.constant 0 : i32
    %c0_i32_0 = arith.constant 0 : i32
    %c0_i32_1 = arith.constant 0 : i32
    return %c0_i32, %c0_i32_0 : i32, i32
  }
  func.func @transform_1(%arg0: i32, %arg1: memref<2x8xi32, #tpu.memory_space<smem>>) -> (i32, i32) {
    %c0_i32 = arith.constant 0 : i32
    %c0_i32_0 = arith.constant 0 : i32
    %c0_i32_1 = arith.constant 0 : i32
    return %c0_i32, %c0_i32_0 : i32, i32
  }
  func.func @transform_2(%arg0: i32, %arg1: memref<2x8xi32, #tpu.memory_space<smem>>) -> (i32, i32, i32) {
    %c0_i32 = arith.constant 0 : i32
    %c0_i32_0 = arith.constant 0 : i32
    %c0_i32_1 = arith.constant 0 : i32
    return %arg0, %c0_i32, %c0_i32_0 : i32, i32, i32
  }
}

</mosaic_0001>

<llo_original>
// kernel: tpu_custom_call.1
$region0: #{tpu_custom_call.1}
  #allocation0 [shape = 'u32[]', space=smem, size = 0x4, offset = 0x4, fixed_abs, tag = 'smem constant byte address 0x4 - core index']
  #allocation1 [shape = 'u32[144,128]{1,0:T(1,128)}', space=vmem, size = 0x12000, scoped, tag = 'internal scratch']
  #allocation2 [shape = 's32[1]{0}', space=sflag, size = 0x4, scoped, tag = 'scoped memory for tpu_custom_call.1']
  #allocation3 [shape = 'u8[1024]{0}', space=smem, size = 0x400, scoped, tag = 'prefetched SMEM operand 0']
  %s0 = inlined_call_operand.vmem [shape: s32[2,8], index: 0, kind: input, shape index: {}]
  %s1 = inlined_call_operand.vmem [shape: bf16[128,32], index: 1, kind: input, shape index: {}]
  %s2 = inlined_call_operand.vmem [shape: bf16[16,32], index: 2, kind: input, shape index: {}]
  %s3 = inlined_call_operand.hbm [shape: f32[2,24,128], index: 3, kind: output, shape index: {}]
  %s4 = sld [smem:[#allocation0]]
  $region41: #{tpu_custom_call.1} parent=0
    _
  %s6 = ssub.s32 1, %s4
  %s7 = scalar_select 0, %s6, %s4
  %s8 = sshll.u32 %s0, 4
  %s9 = int_to_ptr.vmem [resolvable:$true] %s8
  %11 = dma.vmem_to_smem %s9, 32, [#allocation3], [#allocation2]
  %12 = dma.done [#allocation2], 32
  %13 = sfence
  $region1: #{tpu_custom_call.1} parent=0
    #allocation4 [shape = 'u8[24576]{0}', space=vmem, size = 0x6000, scoped, tag = 'output window, operand 0']
    #allocation5 [shape = 's32[2]{0}', space=sflag, size = 0x8, scoped, tag = 'scoped memory for tpu_custom_call.1']
    %14 = vsyncpa [#allocation5], 0
    %s15 = scalar_lea.sflag [#allocation5], 1
    %16 = vsyncpa %s15, 0
    loop: start=0, step=1, limit=4
    $region2: #{tpu_custom_call.1} parent=1 // loop_pre_header
      _
    $region3: #{tpu_custom_call.1} parent=1 // loop_header
      %s18 = sphi 0, %s22
      %p19 = scmp.ge.s32.totalorder %s18, 4
      %s26 = sphi 0, %s26
      %s28 = sphi 0, %s26
      %s29 = sphi 0, %s28
      %s43 = sphi 0, %s29
      %s47 = sphi 0, %s47
      %s49 = sphi 0, %s47
      %s50 = sphi 0, %s49
      %s64 = sphi 0, %s50
      %s70 = sphi 0, %s72
      %s73 = sphi 0, %s70
      %s74 = sphi 0, %s73
      %s90 = sphi 0, %s74
    $region4: #{tpu_custom_call.1} parent=1 // loop_header_branch
      %21 = sbr.rel (%p19) target = $region8
    $region5: #{tpu_custom_call.1} parent=1 // loop_body
      %s23 = ssub.s32 %s18, 1
      %s24 = ssub.s32 %s18, 2
      %s25 = sadd.s32 %s18, 1
      %s27 = sadd.s32 %s26, 1
      %p30 = scmp.eq.s32.totalorder %s18, 1
      %p31 = scmp.ne.s32.totalorder %s26, %s28
      %p32 = scmp.eq.s32.totalorder %s18, 0
      %p33 = por %p31, %p32
      %p34 = scmp.ne.s32.totalorder %s26, %s28
      %p35 = scmp.eq.s32.totalorder %s23, 1
      %p36 = por %p34, %p35
      %p37 = scmp.ne.s32.totalorder %s28, %s29
      %p38 = scmp.eq.s32.totalorder %s23, 0
      %p39 = por %p37, %p38
      %p40 = scmp.ne.s32.totalorder %s28, %s29
      %p41 = scmp.eq.s32.totalorder %s24, 1
      %p42 = por %p40, %p41
      %p44 = scmp.ne.s32.totalorder %s29, %s43
      %p45 = scmp.eq.s32.totalorder %s24, 0
      %p46 = por %p44, %p45
      %s48 = sadd.s32 %s47, 1
      %p51 = scmp.eq.s32.totalorder %s18, 1
      %p52 = scmp.ne.s32.totalorder %s47, %s49
      %p53 = scmp.eq.s32.totalorder %s18, 0
      %p54 = por %p52, %p53
      %p55 = scmp.ne.s32.totalorder %s47, %s49
      %p56 = scmp.eq.s32.totalorder %s23, 1
      %p57 = por %p55, %p56
      %p58 = scmp.ne.s32.totalorder %s49, %s50
      %p59 = scmp.eq.s32.totalorder %s23, 0
      %p60 = por %p58, %p59
      %p61 = scmp.ne.s32.totalorder %s49, %s50
      %p62 = scmp.eq.s32.totalorder %s24, 1
      %p63 = por %p61, %p62
      %p65 = scmp.ne.s32.totalorder %s50, %s64
      %p66 = scmp.eq.s32.totalorder %s24, 0
      %p67 = por %p65, %p66
      %s68 = ssub.s32 %s18, %s25
      %p69 = scmp.eq.s32.totalorder %s68, 0
      %s71 = sadd.s32 %s70, 1
      %s72 = scalar_select %p69, %s70, %s71
      %p75 = pneg %p69
      %p76 = scmp.eq.s32.totalorder %s18, 1
      %p77 = por %p75, %p76
      %p78 = scmp.ne.s32.totalorder %s70, %s73
      %p79 = scmp.eq.s32.totalorder %s18, 0
      %p80 = por %p78, %p79
      %p81 = scmp.ne.s32.totalorder %s70, %s73
      %p82 = scmp.eq.s32.totalorder %s23, 1
      %p83 = por %p81, %p82
      %p84 = scmp.ne.s32.totalorder %s73, %s74
      %p85 = scmp.eq.s32.totalorder %s23, 0
      %p86 = por %p84, %p85
      %p87 = scmp.ne.s32.totalorder %s73, %s74
      %p88 = scmp.eq.s32.totalorder %s24, 1
      %p89 = por %p87, %p88
      %p91 = scmp.ne.s32.totalorder %s74, %s90
      %p92 = scmp.eq.s32.totalorder %s24, 0
      %p93 = por %p91, %p92
      %p94 = scmp.le.s32.totalorder 1, %s18
      %p95 = scmp.lt.s32.totalorder %s18, 3
      %p96 = pnand %p94, %p95
      %p97 = pneg %p96
      // Predicated region
      $region9: #{tpu_custom_call.1} parent=5 // pred_check
        _
      $region10: #{tpu_custom_call.1} parent=5 // pred_check_branch
        %99 = sbr.rel (%p96) target = $region12
      $region11: #{tpu_custom_call.1} parent=5 // pred_region
        %s100 = ssub.s32 %s18, 1
        // Predicated region
        $region13: #{tpu_custom_call.1} parent=11 // pred_check
          %p101 = pneg %p39
        $region14: #{tpu_custom_call.1} parent=11 // pred_check_branch
          %103 = sbr.rel (%p101) target = $region16
        $region15: #{tpu_custom_call.1} parent=11 // pred_region
          _
        $region16: #{tpu_custom_call.1} parent=11 // pred_fallthru
          _
        // Predicated region
        $region17: #{tpu_custom_call.1} parent=11 // pred_check
          %p104 = pneg %p60
        $region18: #{tpu_custom_call.1} parent=11 // pred_check_branch
          %106 = sbr.rel (%p104) target = $region20
        $region19: #{tpu_custom_call.1} parent=11 // pred_region
          _
        $region20: #{tpu_custom_call.1} parent=11 // pred_fallthru
          _
      $region12: #{tpu_custom_call.1} parent=5 // pred_fallthru
        _
      %p107 = scmp.lt.s32.totalorder %s18, 2
      // Predicated region
      $region21: #{tpu_custom_call.1} parent=5 // pred_check
        %p108 = pneg %p107
      $region22: #{tpu_custom_call.1} parent=5 // pred_check_branch
        %110 = sbr.rel (%p108) target = $region24
      $region23: #{tpu_custom_call.1} parent=5 // pred_region
        _
      $region24: #{tpu_custom_call.1} parent=5 // pred_fallthru
        _
      %p111 = scmp.le.s32.totalorder 1, %s18
      %p112 = scmp.lt.s32.totalorder %s18, 3
      %p113 = pnand %p111, %p112
      %p114 = pneg %p113
      // Predicated region
      $region25: #{tpu_custom_call.1} parent=5 // pred_check
        _
      $region26: #{tpu_custom_call.1} parent=5 // pred_check_branch
        %116 = sbr.rel (%p113) target = $region28
      $region27: #{tpu_custom_call.1} parent=5 // pred_region
        %s117 = ssub.s32 %s18, 1
        %p118 = pneg %p39
        %p119 = pneg %p36
        %p120 = pneg %p60
        %p121 = pneg %p57
        %p122 = pneg %p86
        %p123 = pneg %p83
        %s124 = sand.u32 %s73, 1
        %s125 = scalar_lea.sflag [#allocation5], %s124
        %s126 = sand.u32 %s73, 1
        %s127 = smul.addr %s126, 24
        %s128 = scalar_lea.vmem [#allocation4], %s127
        %v130 = vlaneseq
        %v131 = vand.u32 %v130, 127
        %s132 = smul.u32 %s23, 128
        %s133 = sld [smem:[#allocation3 + %s132]]
        %v134 = vstv %s133
        %vm135 = vcmp.eq.s32.totalorder %v131, %v134
        %v136 = vsel %vm135, 1, 0
        %v137 = vcvt.s32.f32 %v136
        %v138 = vpack.c.bf16 %v137, %v137
        %s139 = sadd.s32 %s132, 1
        %s140 = sld [smem:[#allocation3 + %s139]]
        %v141 = vstv %s140
        %vm142 = vcmp.eq.s32.totalorder %v131, %v141
        %v143 = vsel %vm142, 1, 0
        %v144 = vcvt.s32.f32 %v143
        %v145 = vpack.c.bf16 %v144, %v144
        %s146 = sadd.s32 %s132, 2
        %s147 = sld [smem:[#allocation3 + %s146]]
        %v148 = vstv %s147
        %vm149 = vcmp.eq.s32.totalorder %v131, %v148
        %v150 = vsel %vm149, 1, 0
        %v151 = vcvt.s32.f32 %v150
        %v152 = vpack.c.bf16 %v151, %v151
        %s153 = sadd.s32 %s132, 3
        %s154 = sld [smem:[#allocation3 + %s153]]
        %v155 = vstv %s154
        %vm156 = vcmp.eq.s32.totalorder %v131, %v155
        %v157 = vsel %vm156, 1, 0
        %v158 = vcvt.s32.f32 %v157
        %v159 = vpack.c.bf16 %v158, %v158
        %s160 = sadd.s32 %s132, 4
        %s161 = sld [smem:[#allocation3 + %s160]]
        %v162 = vstv %s161
        %vm163 = vcmp.eq.s32.totalorder %v131, %v162
        %v164 = vsel %vm163, 1, 0
        %v165 = vcvt.s32.f32 %v164
        %v166 = vpack.c.bf16 %v165, %v165
        %s167 = sadd.s32 %s132, 5
        %s168 = sld [smem:[#allocation3 + %s167]]
        %v169 = vstv %s168
        %vm170 = vcmp.eq.s32.totalorder %v131, %v169
        %v171 = vsel %vm170, 1, 0
        %v172 = vcvt.s32.f32 %v171
        %v173 = vpack.c.bf16 %v172, %v172
        %s174 = sadd.s32 %s132, 6
        %s175 = sld [smem:[#allocation3 + %s174]]
        %v176 = vstv %s175
        %vm177 = vcmp.eq.s32.totalorder %v131, %v176
        %v178 = vsel %vm177, 1, 0
        %v179 = vcvt.s32.f32 %v178
        %v180 = vpack.c.bf16 %v179, %v179
        %s181 = sadd.s32 %s132, 7
        %s182 = sld [smem:[#allocation3 + %s181]]
        %v183 = vstv %s182
        %vm184 = vcmp.eq.s32.totalorder %v131, %v183
        %v185 = vsel %vm184, 1, 0
        %v186 = vcvt.s32.f32 %v185
        %v187 = vpack.c.bf16 %v186, %v186
        %vm188 = vcmask 1040384
        %vm189 = vsmask.f32 256
        %vm190 = vmand %vm188, %vm189
        %v191 = vsel %vm190, %v138, %v145
        %vm192 = vcmask 1040384
        %v195 = vsel %vm192, %v191, %v152
        %vm197 = vcmask 1041408
        %vm198 = vsmask.f32 1280
        %vm199 = vmand %vm197, %vm198
        %v200 = vsel %vm199, %v195, %v159
        %vm201 = vcmask 1041408
        %v204 = vsel %vm201, %v200, %v166
        %vm206 = vcmask 1042432
        %vm207 = vsmask.f32 2304
        %vm208 = vmand %vm206, %vm207
        %v209 = vsel %vm208, %v204, %v173
        %vm210 = vcmask 1042432
        %v213 = vsel %vm210, %v209, %v180
        %vm215 = vcmask 1043456
        %vm216 = vsmask.f32 3328
        %vm217 = vmand %vm215, %vm216
        %v218 = vsel %vm217, %v213, %v187
        %v219 = vld [vmem:[%s1] sm:$0xf]
        %v220 = vld [vmem:[%s1 + $0x4] sm:$0xf]
        %v221 = vld [vmem:[%s1 + $0x8] sm:$0xf]
        %v222 = vld [vmem:[%s1 + $0xc] sm:$0xf]
        %v223 = vld [vmem:[%s1 + $0x10] sm:$0xf]
        %v224 = vld [vmem:[%s1 + $0x14] sm:$0xf]
        %v225 = vld [vmem:[%s1 + $0x18] sm:$0xf]
        %v226 = vld [vmem:[%s1 + $0x1c] sm:$0xf]
        %v227 = vld [vmem:[%s1 + $0x20] sm:$0xf]
        %v228 = vld [vmem:[%s1 + $0x24] sm:$0xf]
        %v229 = vld [vmem:[%s1 + $0x28] sm:$0xf]
        %v230 = vld [vmem:[%s1 + $0x2c] sm:$0xf]
        %v231 = vld [vmem:[%s1 + $0x30] sm:$0xf]
        %v232 = vld [vmem:[%s1 + $0x34] sm:$0xf]
        %v233 = vld [vmem:[%s1 + $0x38] sm:$0xf]
        %v234 = vld [vmem:[%s1 + $0x3c] sm:$0xf]
        %v251 = vunpack.c.l.b16 %v219
        %v252 = vunpack.c.l.b16 %v220
        %v253 = vunpack.c.l.b16 %v221
        %v254 = vunpack.c.l.b16 %v222
        %v255 = vunpack.c.l.b16 %v223
        %v256 = vunpack.c.l.b16 %v224
        %v257 = vunpack.c.l.b16 %v225
        %v258 = vunpack.c.l.b16 %v226
        %v259 = vunpack.c.l.b16 %v227
        %v260 = vunpack.c.l.b16 %v228
        %v261 = vunpack.c.l.b16 %v229
        %v262 = vunpack.c.l.b16 %v230
        %v263 = vunpack.c.l.b16 %v231
        %v264 = vunpack.c.l.b16 %v232
        %v265 = vunpack.c.l.b16 %v233
        %v266 = vunpack.c.l.b16 %v234
        %v267 = vpack.c.b16 %v252, %v251
        %v268 = vpack.c.b16 %v254, %v253
        %v269 = vpack.c.b16 %v256, %v255
        %v270 = vpack.c.b16 %v258, %v257
        %v271 = vpack.c.b16 %v260, %v259
        %v272 = vpack.c.b16 %v262, %v261
        %v273 = vpack.c.b16 %v264, %v263
        %v274 = vpack.c.b16 %v266, %v265
        %283 = vmatprep.subr.bf16.mxu0 0
        %284 = vmatpush1.bf16.msra.mxu0 %v267
        %285 = vmatprep.subr.bf16.mxu0 0
        %286 = vmatpush1.bf16.msra.mxu0 %v268
        %287 = vmatprep.subr.bf16.mxu0 0
        %288 = vmatpush1.bf16.msra.mxu0 %v269
        %289 = vmatprep.subr.bf16.mxu0 0
        %290 = vmatpush1.bf16.msra.mxu0 %v270
        %291 = vmatprep.subr.bf16.mxu0 0
        %292 = vmatpush1.bf16.msra.mxu0 %v271
        %293 = vmatprep.subr.bf16.mxu0 0
        %294 = vmatpush1.bf16.msra.mxu0 %v272
        %295 = vmatprep.subr.bf16.mxu0 0
        %296 = vmatpush1.bf16.msra.mxu0 %v273
        %297 = vmatprep.subr.bf16.mxu0 0
        %298 = vmatpush1.bf16.msra.mxu0 %v274
        %299 = vmatprep.subr.bf16.mxu0 0
        %300 = vmatpush1.bf16.msra.mxu0 0
        %301 = vmatprep.subr.bf16.mxu0 0
        %302 = vmatpush1.bf16.msra.mxu0 0
        %303 = vmatprep.subr.bf16.mxu0 0
        %304 = vmatpush1.bf16.msra.mxu0 0
        %305 = vmatprep.subr.bf16.mxu0 0
        %306 = vmatpush1.bf16.msra.mxu0 0
        %307 = vmatprep.subr.bf16.mxu0 0
        %308 = vmatpush1.bf16.msra.mxu0 0
        %309 = vmatprep.subr.bf16.mxu0 0
        %310 = vmatpush1.bf16.msra.mxu0 0
        %311 = vmatprep.subr.bf16.mxu0 0
        %312 = vmatpush1.bf16.msra.mxu0 0
        %313 = vmatprep.subr.bf16.mxu0 0
        %314 = vmatpush1.bf16.msra.mxu0 0
        %315 = vmatprep.mubr.bf16.mxu0 0
        %316 = vmatmul.mubr.bf16.gmra.mrb[0].mxu0 %v218
        %v317 = vpop.f32.mrb[0].mxu0
        %v318 = vadd.f32 0.0, %v317
        %v319 = vpop.f32.mrb[0].mxu0
        %v320 = vpop.f32.mrb[0].mxu0
        %v321 = vpop.f32.mrb[0].mxu0
        %322 = vdwg.mxu0
        %v323 = vpack.c.bf16 %v318, %v318
        %v324 = vld [vmem:[%s2] sm:$0xf]
        %v325 = vld [vmem:[%s2 + $0x4] sm:$0xf]
        %v328 = vunpack.c.l.b16 %v324
        %v329 = vunpack.c.l.b16 %v325
        %v330 = vpack.c.b16 %v329, %v328
        %vm331 = vcmask 261120
        %v333 = vsel %vm331, %v330, 0
        %v336 = vsel %vm331, %v323, 0
        %v339 = vsel %vm331, %v267, 0
        %v342 = vsel %vm331, %v268, 0
        %v345 = vsel %vm331, %v269, 0
        %v348 = vsel %vm331, %v270, 0
        %v351 = vsel %vm331, %v271, 0
        %v354 = vsel %vm331, %v272, 0
        %v357 = vsel %vm331, %v273, 0
        %v360 = vsel %vm331, %v274, 0
        %362 = vmatprep.subr.bf16.mxu0 0
        %363 = vmatpush1.bf16.xpose.msra.mxu0 %v339
        %364 = vmatprep.subr.bf16.mxu0 0
        %365 = vmatpush1.bf16.xpose.msra.mxu0 %v342
        %366 = vmatprep.subr.bf16.mxu0 0
        %367 = vmatpush1.bf16.xpose.msra.mxu0 %v345
        %368 = vmatprep.subr.bf16.mxu0 0
        %369 = vmatpush1.bf16.xpose.msra.mxu0 %v348
        %370 = vmatprep.subr.bf16.mxu0 0
        %371 = vmatpush1.bf16.xpose.msra.mxu0 %v351
        %372 = vmatprep.subr.bf16.mxu0 0
        %373 = vmatpush1.bf16.xpose.msra.mxu0 %v354
        %374 = vmatprep.subr.bf16.mxu0 0
        %375 = vmatpush1.bf16.xpose.msra.mxu0 %v357
        %376 = vmatprep.subr.bf16.mxu0 0
        %377 = vmatpush1.bf16.xpose.msra.mxu0 %v360
        %378 = vmatprep.subr.bf16.mxu0 0
        %379 = vmatpush1.bf16.xpose.msra.mxu0 0
        %380 = vmatprep.subr.bf16.mxu0 0
        %381 = vmatpush1.bf16.xpose.msra.mxu0 0
        %382 = vmatprep.subr.bf16.mxu0 0
        %383 = vmatpush1.bf16.xpose.msra.mxu0 0
        %384 = vmatprep.subr.bf16.mxu0 0
        %385 = vmatpush1.bf16.xpose.msra.mxu0 0
        %386 = vmatprep.subr.bf16.mxu0 0
        %387 = vmatpush1.bf16.xpose.msra.mxu0 0
        %388 = vmatprep.subr.bf16.mxu0 0
        %389 = vmatpush1.bf16.xpose.msra.mxu0 0
        %390 = vmatprep.subr.bf16.mxu0 0
        %391 = vmatpush1.bf16.xpose.msra.mxu0 0
        %392 = vmatprep.subr.bf16.mxu0 0
        %393 = vmatpush1.bf16.xpose.msra.mxu0 0
        %394 = vmatprep.mubr.bf16.mxu0 0
        %395 = vmatmul.mubr.bf16.gmra.mrb[0].mxu0 %v333
        %v396 = vpop.f32.mrb[0].mxu0
        %v397 = vadd.f32 0.0, %v396
        %v398 = vpop.f32.mrb[0].mxu0
        %v399 = vpop.f32.mrb[0].mxu0
        %v400 = vadd.f32 0.0, %v399
        %v401 = vpop.f32.mrb[0].mxu0
        %402 = vmatprep.mubr.bf16.mxu0 0
        %403 = vmatmul.mubr.bf16.gmra.mrb[0].mxu0 %v336
        %v404 = vpop.f32.mrb[0].mxu0
        %v405 = vadd.f32 0.0, %v404
        %v406 = vpop.f32.mrb[0].mxu0
        %v407 = vpop.f32.mrb[0].mxu0
        %v408 = vpop.f32.mrb[0].mxu0
        %409 = vdwg.mxu0
        %410 = vst [vmem:[%s128] sm:$0xff] %v397
        %411 = vst [vmem:[%s128 + $0x8] sm:$0xff] %v400
        %412 = vst [vmem:[%s128 + $0x10] sm:$0xff] %v405
        %s413 = sand.u32 %s73, 1
        %s414 = scalar_lea.sflag [#allocation5], %s413
        %s415 = sand.u32 %s73, 1
        %s416 = smul.addr %s415, 24
        %s417 = scalar_lea.vmem [#allocation4], %s416
        // Predicated region
        $region29: #{tpu_custom_call.1} parent=27 // pred_check
          %p418 = pneg %p83
        $region30: #{tpu_custom_call.1} parent=27 // pred_check_branch
          %420 = sbr.rel (%p418) target = $region32
        $region31: #{tpu_custom_call.1} parent=27 // pred_region
          %s422 = ssub.s32 384, 384
          %423 = vsyncadd %s414, %s422
          %s424 = smul.addr %s23, 3
          %s425 = smul.addr %s424, 128
          %s426 = scalar_lea.hbm %s3, %s425
          %s427 = sshll.u32 %s417, 4
          %s428 = int_to_ptr.vmem [resolvable:$true] %s427
          %433 = dma.vmem_to_hbm [thread:$0]  %s428, 384, %s426, %s414, 128, 128, 8
        $region32: #{tpu_custom_call.1} parent=27 // pred_fallthru
          _
      $region28: #{tpu_custom_call.1} parent=5 // pred_fallthru
        _
      %p434 = scmp.le.s32.totalorder 2, %s18
      // Predicated region
      $region33: #{tpu_custom_call.1} parent=5 // pred_check
        %p435 = pneg %p434
      $region34: #{tpu_custom_call.1} parent=5 // pred_check_branch
        %437 = sbr.rel (%p435) target = $region36
      $region35: #{tpu_custom_call.1} parent=5 // pred_region
        %s438 = ssub.s32 %s18, 2
        // Predicated region
        $region37: #{tpu_custom_call.1} parent=35 // pred_check
          %p439 = pneg %p89
        $region38: #{tpu_custom_call.1} parent=35 // pred_check_branch
          %441 = sbr.rel (%p439) target = $region40
        $region39: #{tpu_custom_call.1} parent=35 // pred_region
          %s442 = sand.u32 %s74, 1
          %s443 = scalar_lea.sflag [#allocation5], %s442
          %s444 = sand.u32 %s74, 1
          %s445 = smul.addr %s444, 24
          %s446 = scalar_lea.vmem [#allocation4], %s445
          %447 = dma.done %s443, 384
        $region40: #{tpu_custom_call.1} parent=35 // pred_fallthru
          _
      $region36: #{tpu_custom_call.1} parent=5 // pred_fallthru
        _
    $region6: #{tpu_custom_call.1} parent=1 // loop_footer
      %s22 = sadd.s32 1, %s18
    $region7: #{tpu_custom_call.1} parent=1 // loop_footer_branch
      %17 = sbr.rel target = $region3
    $region8: #{tpu_custom_call.1} parent=1 // loop_exit
      _
    %448 = vsyncpa [#allocation5], 1
    %s449 = scalar_lea.sflag [#allocation5], 1
    %450 = vsyncpa %s449, 1

</llo_original>
